<compile_context>
chip_gen: v5e
topology: v5e:2x2
jax: 0.10.0
libtpu: 0.0.40
codegen_flags: <defaults>
</compile_context>

<pallas_src>
import jax
import jax.numpy as jnp
from jax.experimental import pallas as pl
from jax.experimental.pallas import tpu as pltpu


_NEG_LARGE = -1.0e30  # bias for padded vocab lanes -> exp underflows to exactly 0


def embed_mlp_softmax_kernel(idx_ref, emb_ref, w1_ref, b1_ref, w2_ref, b2_ref, o_ref):
    """Fused gather -> Linear -> ReLU -> Linear -> softmax on one token tile.

    idx_ref: (TN, 1)  int32  token ids for this tile
    emb_ref: (V, D)          embedding table   (VMEM-resident across grid)
    w1_ref : (D, D)   b1_ref: (1, D)  f32
    w2_ref : (D, Vp)  b2_ref: (1, Vp) f32        Vp = vocab padded to mult of 128
    o_ref  : (TN, Vp) f32    softmax probabilities (padded lanes are exactly 0)
    """
    tn = idx_ref.shape[0]
    v = emb_ref.shape[0]

    # --- Embedding gather fused as an exact one-hot matmul on the MXU. ---
    idx = idx_ref[...]                                           # (TN, 1) int32
    lane_ids = jax.lax.broadcasted_iota(jnp.int32, (tn, v), 1)   # (TN, V)
    onehot = (lane_ids == idx).astype(emb_ref.dtype)             # exact 0/1
    x = jnp.dot(onehot, emb_ref[...],
                preferred_element_type=jnp.float32)              # (TN, D) f32

    # --- Linear(D, D) + ReLU  (f32 accumulation, post-matmul math in f32). ---
    h = jnp.dot(x.astype(w1_ref.dtype), w1_ref[...],
                preferred_element_type=jnp.float32) + b1_ref[...]
    h = jnp.maximum(h, 0.0)

    # --- Linear(D, Vp). Padded columns of w2 are 0, padded b2 lanes are -1e30. ---
    a = jnp.dot(h.astype(w2_ref.dtype), w2_ref[...],
                preferred_element_type=jnp.float32) + b2_ref[...]

    # --- Numerically stable softmax over the (padded) vocab lanes. ---
    a = a - jnp.max(a, axis=-1, keepdims=True)
    e = jnp.exp(a)                                   # padded lanes -> exactly 0
    denom = jnp.sum(e, axis=-1, keepdims=True)       # >= 1 after max-shift
    # EUP approximate reciprocal (free bundle slot) + one Newton refinement
    # step to recover ~f32 accuracy on the (TN, 1) denominators.
    r = pl.reciprocal(denom, approx=True)
    r = r * (2.0 - denom * r)
    o_ref[...] = (e * r).astype(o_ref.dtype)


def simple_broken_model_forward(idx, emb_table, w1, b1, w2, b2,
                                *, compute_dtype=jnp.float32, block_tokens=512):
    """JAX/Pallas equivalent of SimpleBrokenModel.forward(idx) (targets=None path).

    idx:       (B, S) int32 token ids
    emb_table: (V, D) f32;  w1: (D, D);  b1: (D,);  w2: (D, V);  b2: (V,)
    returns:   (B, S, V) f32 softmax probabilities
    """
    B, S = idx.shape
    V, D = emb_table.shape
    N = B * S

    # Lane-dense output: pad vocab up to a multiple of 128 so stores are full vst.
    Vp = 128 * pl.cdiv(V, 128)

    # Token tile size: as large as practical (MXU feed + pipelining), multiple of 8,
    # capped so 2x double-buffered (TN x Vp) f32 output tiles + resident weights sit
    # comfortably inside v7x's 64 MiB VMEM (v5e/v6e have 128 MiB, so also safe).
    if N >= 8:
        TN = max(8, (min(block_tokens, N) // 8) * 8)
    else:
        TN = N
    n_blocks = pl.cdiv(N, TN)
    N_pad = n_blocks * TN

    # Flatten & pad token ids; pad W2/b2 along the vocab lanes (all traced, so
    # under jit this fuses into the surrounding XLA program).
    idx2d = idx.reshape(N, 1).astype(jnp.int32)
    if N_pad != N:
        idx2d = jnp.pad(idx2d, ((0, N_pad - N), (0, 0)))  # pad rows reuse token 0
    emb_c = emb_table.astype(compute_dtype)
    w1_c = w1.astype(compute_dtype)
    b1_2d = b1.reshape(1, D).astype(jnp.float32)
    w2p = jnp.zeros((D, Vp), compute_dtype).at[:, :V].set(w2.astype(compute_dtype))
    b2p = jnp.full((1, Vp), _NEG_LARGE, jnp.float32).at[0, :V].set(
        b2.astype(jnp.float32))

    out = pl.pallas_call(
        embed_mlp_softmax_kernel,
        out_shape=jax.ShapeDtypeStruct((N_pad, Vp), jnp.float32),
        grid_spec=pltpu.PrefetchScalarGridSpec(
            num_scalar_prefetch=0,
            grid=(n_blocks,),
            in_specs=[
                pl.BlockSpec((TN, 1), lambda i: (i, 0)),   # idx tile (per grid step)
                pl.BlockSpec((V, D), lambda i: (0, 0)),    # embedding (resident)
                pl.BlockSpec((D, D), lambda i: (0, 0)),    # w1        (resident)
                pl.BlockSpec((1, D), lambda i: (0, 0)),    # b1
                pl.BlockSpec((D, Vp), lambda i: (0, 0)),   # w2 padded (resident)
                pl.BlockSpec((1, Vp), lambda i: (0, 0)),   # b2 padded
            ],
            out_specs=pl.BlockSpec((TN, Vp), lambda i: (i, 0)),
        ),
        compiler_params=pltpu.CompilerParams(
            # Token tiles are independent -> shard across v7x's 2 TensorCores.
            dimension_semantics=("parallel",)),
    )(idx2d, emb_c, w1_c, b1_2d, w2p, b2p)

    # TODO(synk): for real vocab sizes (e.g. 32k) the full-row softmax reduce must
    # be restructured as a two-pass / online softmax over vocab tiles.
    return out[:N, :V].reshape(B, S, V)


def reference_forward(idx, emb_table, w1, b1, w2, b2):
    x = emb_table[idx]
    h = jnp.maximum(x @ w1 + b1, 0.0)
    a = h @ w2 + b2
    return jax.nn.softmax(a, axis=-1)


if __name__ == "__main__":
    # MASTER_CONFIG-equivalent small shapes.
    vocab_size = 32
    d_model = 32
    B, S = 2, 8

    key = jax.random.PRNGKey(0)
    k_emb, k_w1, k_b1, k_w2, k_b2, k_idx = jax.random.split(key, 6)

    # Deterministic parameter init (shapes from nn.Embedding / nn.Linear).
    emb_table = jax.random.normal(k_emb, (vocab_size, d_model), jnp.float32)
    lim1 = 1.0 / (d_model ** 0.5)
    w1 = jax.random.uniform(k_w1, (d_model, d_model), jnp.float32, -lim1, lim1)
    b1 = jax.random.uniform(k_b1, (d_model,), jnp.float32, -lim1, lim1)
    w2 = jax.random.uniform(k_w2, (d_model, vocab_size), jnp.float32, -lim1, lim1)
    b2 = jax.random.uniform(k_b2, (vocab_size,), jnp.float32, -lim1, lim1)

    idx = jax.random.randint(k_idx, (B, S), 0, vocab_size, jnp.int32)

    # Jit the whole forward so the wrapper-side padding/casts fuse with the
    # Pallas custom call (weights closed over as constants of the trace).
    fwd = jax.jit(lambda t: simple_broken_model_forward(
        t, emb_table, w1, b1, w2, b2))

    probs = fwd(idx)
    probs = jax.block_until_ready(probs)

    ref = reference_forward(idx, emb_table, w1, b1, w2, b2)
    assert probs.shape == (B, S, vocab_size)
    # 5e-5 leaves headroom for the Newton-refined EUP reciprocal; the f32 matmul
    # path otherwise matches the plain-JAX reference.
    assert jnp.allclose(probs, ref, atol=5e-5, rtol=5e-5), \
        float(jnp.max(jnp.abs(probs - ref)))
    assert jnp.allclose(jnp.sum(probs, axis=-1), 1.0, atol=5e-5)

    # TODO(synk): cross_entropy loss branch (targets is not None) stays in plain
    # JAX; it is not part of the Pallas hot path here.
    print("KERNEL_OK")
</pallas_src>

<mosaic_0001>
module attributes {stable_mosaic.version = 11 : i64} {
  func.func @embed_mlp_softmax_kernel(%arg0: i32, %arg1: memref<16x1xi32, #tpu.memory_space<vmem>>, %arg2: memref<32x32xf32, #tpu.memory_space<vmem>>, %arg3: memref<32x32xf32, #tpu.memory_space<vmem>>, %arg4: memref<1x32xf32, #tpu.memory_space<vmem>>, %arg5: memref<32x128xf32, #tpu.memory_space<vmem>>, %arg6: memref<1x128xf32, #tpu.memory_space<vmem>>, %arg7: memref<16x128xf32, #tpu.memory_space<vmem>>) attributes {dimension_semantics = [#tpu.dimension_semantics<parallel>], iteration_bounds = array<i64: 1>, scalar_prefetch = 0 : i64, scratch_operands = 0 : i64, tpu.core_type = #tpu.core_type<tc>, window_params = [{transform_indices = @transform_0, window_bounds = array<i64: 16, 1>}, {pipeline_mode = #tpu.pipeline_mode<synchronous>, transform_indices = @transform_1, window_bounds = array<i64: 32, 32>}, {pipeline_mode = #tpu.pipeline_mode<synchronous>, transform_indices = @transform_2, window_bounds = array<i64: 32, 32>}, {pipeline_mode = #tpu.pipeline_mode<synchronous>, transform_indices = @transform_3, window_bounds = array<i64: 1, 32>}, {pipeline_mode = #tpu.pipeline_mode<synchronous>, transform_indices = @transform_4, window_bounds = array<i64: 32, 128>}, {pipeline_mode = #tpu.pipeline_mode<synchronous>, transform_indices = @transform_5, window_bounds = array<i64: 1, 128>}, {transform_indices = @transform_6, window_bounds = array<i64: 16, 128>}]} {
    %c0 = arith.constant 0 : index
    %c0_0 = arith.constant 0 : index
    %0 = vector.load %arg1[%c0, %c0_0] : memref<16x1xi32, #tpu.memory_space<vmem>>, vector<16x1xi32>
    %1 = tpu.iota {dimensions = array<i32: 1>} : vector<16x32xi32>
    %2 = vector.broadcast %0 : vector<16x1xi32> to vector<16x32xi32>
    %3 = arith.cmpi eq, %1, %2 : vector<16x32xi32>
    %4 = arith.extui %3 : vector<16x32xi1> to vector<16x32xi32>
    %5 = arith.sitofp %4 : vector<16x32xi32> to vector<16x32xf32>
    %c0_1 = arith.constant 0 : index
    %c0_2 = arith.constant 0 : index
    %6 = vector.load %arg2[%c0_1, %c0_2] : memref<32x32xf32, #tpu.memory_space<vmem>>, vector<32x32xf32>
    %cst = arith.constant dense<0.000000e+00> : vector<16x32xf32>
    %7 = tpu.matmul %5, %6, %cst {dimension_numbers = #tpu.dot_dimension_numbers<[1], [0], [0], [1], [0, 0, 1, 1], [], []>} : vector<16x32xf32>, vector<32x32xf32>, vector<16x32xf32> -> vector<16x32xf32>
    %c0_3 = arith.constant 0 : index
    %c0_4 = arith.constant 0 : index
    %8 = vector.load %arg3[%c0_3, %c0_4] : memref<32x32xf32, #tpu.memory_space<vmem>>, vector<32x32xf32>
    %cst_5 = arith.constant dense<0.000000e+00> : vector<16x32xf32>
    %9 = tpu.matmul %7, %8, %cst_5 {dimension_numbers = #tpu.dot_dimension_numbers<[1], [0], [0], [1], [0, 0, 1, 1], [], []>} : vector<16x32xf32>, vector<32x32xf32>, vector<16x32xf32> -> vector<16x32xf32>
    %c0_6 = arith.constant 0 : index
    %c0_7 = arith.constant 0 : index
    %10 = vector.load %arg4[%c0_6, %c0_7] : memref<1x32xf32, #tpu.memory_space<vmem>>, vector<1x32xf32>
    %11 = vector.broadcast %10 : vector<1x32xf32> to vector<16x32xf32>
    %12 = arith.addf %9, %11 : vector<16x32xf32>
    %cst_8 = arith.constant 0.000000e+00 : f32
    %13 = vector.broadcast %cst_8 : f32 to vector<16x32xf32>
    %14 = arith.maximumf %12, %13 : vector<16x32xf32>
    %c0_9 = arith.constant 0 : index
    %c0_10 = arith.constant 0 : index
    %15 = vector.load %arg5[%c0_9, %c0_10] : memref<32x128xf32, #tpu.memory_space<vmem>>, vector<32x128xf32>
    %cst_11 = arith.constant dense<0.000000e+00> : vector<16x128xf32>
    %16 = tpu.matmul %14, %15, %cst_11 {dimension_numbers = #tpu.dot_dimension_numbers<[1], [0], [0], [1], [0, 0, 1, 1], [], []>} : vector<16x32xf32>, vector<32x128xf32>, vector<16x128xf32> -> vector<16x128xf32>
    %c0_12 = arith.constant 0 : index
    %c0_13 = arith.constant 0 : index
    %17 = vector.load %arg6[%c0_12, %c0_13] : memref<1x128xf32, #tpu.memory_space<vmem>>, vector<1x128xf32>
    %18 = vector.broadcast %17 : vector<1x128xf32> to vector<16x128xf32>
    %19 = arith.addf %16, %18 : vector<16x128xf32>
    %cst_14 = arith.constant dense<0xFF800000> : vector<16xf32>
    %20 = vector.multi_reduction <maximumf>, %19, %cst_14 [1] : vector<16x128xf32> to vector<16xf32>
    %21 = vector.shape_cast %20 : vector<16xf32> to vector<16x1xf32>
    %22 = vector.broadcast %21 : vector<16x1xf32> to vector<16x128xf32>
    %23 = arith.subf %19, %22 : vector<16x128xf32>
    %24 = math.exp %23 : vector<16x128xf32>
    %cst_15 = arith.constant dense<0.000000e+00> : vector<16xf32>
    %25 = vector.multi_reduction <add>, %24, %cst_15 [1] : vector<16x128xf32> to vector<16xf32>
    %26 = vector.shape_cast %25 : vector<16xf32> to vector<16x1xf32>
    %27 = tpu.reciprocal %26 {approx = true} : vector<16x1xf32> -> vector<16x1xf32>
    %28 = arith.mulf %26, %27 : vector<16x1xf32>
    %cst_16 = arith.constant 2.000000e+00 : f32
    %29 = vector.broadcast %cst_16 : f32 to vector<16x1xf32>
    %30 = arith.subf %29, %28 : vector<16x1xf32>
    %31 = arith.mulf %27, %30 : vector<16x1xf32>
    %32 = vector.broadcast %31 : vector<16x1xf32> to vector<16x128xf32>
    %33 = arith.mulf %24, %32 : vector<16x128xf32>
    %c0_17 = arith.constant 0 : index
    %c0_18 = arith.constant 0 : index
    %34 = vector.load %arg7[%c0_17, %c0_18] : memref<16x128xf32, #tpu.memory_space<vmem>>, vector<16x128xf32>
    tpu.vector_store %arg7[%c0_17, %c0_18], %33 {strides = array<i32>} : memref<16x128xf32, #tpu.memory_space<vmem>>, vector<16x128xf32>,
    return
  }
  func.func @transform_0(%arg0: i32) -> (i32, i32) {
    %c0_i32 = arith.constant 0 : i32
    %c0_i32_0 = arith.constant 0 : i32
    return %arg0, %c0_i32 : i32, i32
  }
  func.func @transform_1(%arg0: i32) -> (i32, i32) {
    %c0_i32 = arith.constant 0 : i32
    %c0_i32_0 = arith.constant 0 : i32
    %c0_i32_1 = arith.constant 0 : i32
    return %c0_i32, %c0_i32_0 : i32, i32
  }
  func.func @transform_2(%arg0: i32) -> (i32, i32) {
    %c0_i32 = arith.constant 0 : i32
    %c0_i32_0 = arith.constant 0 : i32
    %c0_i32_1 = arith.constant 0 : i32
    return %c0_i32, %c0_i32_0 : i32, i32
  }
  func.func @transform_3(%arg0: i32) -> (i32, i32) {
    %c0_i32 = arith.constant 0 : i32
    %c0_i32_0 = arith.constant 0 : i32
    %c0_i32_1 = arith.constant 0 : i32
    return %c0_i32, %c0_i32_0 : i32, i32
  }
  func.func @transform_4(%arg0: i32) -> (i32, i32) {
    %c0_i32 = arith.constant 0 : i32
    %c0_i32_0 = arith.constant 0 : i32
    %c0_i32_1 = arith.constant 0 : i32
    return %c0_i32, %c0_i32_0 : i32, i32
  }
  func.func @transform_5(%arg0: i32) -> (i32, i32) {
    %c0_i32 = arith.constant 0 : i32
    %c0_i32_0 = arith.constant 0 : i32
    %c0_i32_1 = arith.constant 0 : i32
    return %c0_i32, %c0_i32_0 : i32, i32
  }
  func.func @transform_6(%arg0: i32) -> (i32, i32) {
    %c0_i32 = arith.constant 0 : i32
    %c0_i32_0 = arith.constant 0 : i32
    return %arg0, %c0_i32 : i32, i32
  }
}

</mosaic_0001>

<llo_original>
// kernel: _lambda_.1
$region0: #{_lambda_.1}
  #allocation0 [shape = 'u32[]', space=smem, size = 0x4, offset = 0x4, fixed_abs, tag = 'smem constant byte address 0x4 - core index']
  #allocation1 [shape = 'u32[72,128]{1,0:T(1,128)}', space=vmem, size = 0x9000, scoped, tag = 'internal scratch']
  %s0 = inlined_call_operand.vmem [shape: s32[16,1], index: 0, kind: input, shape index: {}]
  %s1 = inlined_call_operand.vmem [shape: f32[32,32], index: 1, kind: input, shape index: {}]
  %s2 = inlined_call_operand.vmem [shape: f32[32,32], index: 2, kind: input, shape index: {}]
  %s3 = inlined_call_operand.vmem [shape: f32[1,32], index: 3, kind: input, shape index: {}]
  %s4 = inlined_call_operand.vmem [shape: f32[32,128], index: 4, kind: input, shape index: {}]
  %s5 = inlined_call_operand.vmem [shape: f32[1,128], index: 5, kind: input, shape index: {}]
  %s6 = inlined_call_operand.vmem [shape: f32[16,128], index: 6, kind: output, shape index: {}]
  %s7 = sld [smem:[#allocation0]]
  $region34: #{_lambda_.1} parent=0
    _
  %s9 = ssub.s32 1, %s7
  %s10 = scalar_select 0, %s9, %s7
  // Predicated region
  $region2: #{_lambda_.1} parent=0 // pred_check
    _
  $region3: #{_lambda_.1} parent=0 // pred_check_branch
    %12 = sbr.rel (0) target = $region5
  $region4: #{_lambda_.1} parent=0 // pred_region
    _
  $region5: #{_lambda_.1} parent=0 // pred_fallthru
    _
  // Predicated region
  $region6: #{_lambda_.1} parent=0 // pred_check
    _
  $region7: #{_lambda_.1} parent=0 // pred_check_branch
    %14 = sbr.rel (0) target = $region9
  $region8: #{_lambda_.1} parent=0 // pred_region
    _
  $region9: #{_lambda_.1} parent=0 // pred_fallthru
    _
  // Predicated region
  $region10: #{_lambda_.1} parent=0 // pred_check
    _
  $region11: #{_lambda_.1} parent=0 // pred_check_branch
    %16 = sbr.rel (0) target = $region13
  $region12: #{_lambda_.1} parent=0 // pred_region
    _
  $region13: #{_lambda_.1} parent=0 // pred_fallthru
    _
  // Predicated region
  $region14: #{_lambda_.1} parent=0 // pred_check
    _
  $region15: #{_lambda_.1} parent=0 // pred_check_branch
    %18 = sbr.rel (0) target = $region17
  $region16: #{_lambda_.1} parent=0 // pred_region
    _
  $region17: #{_lambda_.1} parent=0 // pred_fallthru
    _
  // Predicated region
  $region18: #{_lambda_.1} parent=0 // pred_check
    _
  $region19: #{_lambda_.1} parent=0 // pred_check_branch
    %20 = sbr.rel (0) target = $region21
  $region20: #{_lambda_.1} parent=0 // pred_region
    _
  $region21: #{_lambda_.1} parent=0 // pred_fallthru
    _
  // Predicated region
  $region22: #{_lambda_.1} parent=0 // pred_check
    _
  $region23: #{_lambda_.1} parent=0 // pred_check_branch
    %22 = sbr.rel (0) target = $region25
  $region24: #{_lambda_.1} parent=0 // pred_region
    _
  $region25: #{_lambda_.1} parent=0 // pred_fallthru
    _
  %v23 = vld [vmem:[%s0] sm:$0xff]
  %v24 = vld [vmem:[%s0 + $0x8] sm:$0xff]
  %v25 = vlaneseq
  %v26 = vand.u32 %v25, 127
  %27 = vset.pattern.permute.xlu0 0
  %28 = vperm.xlu0 %27, %v23
  %v29 = vpop.permute.xlu0 %28
  %30 = vset.pattern.permute.xlu0 0
  %31 = vperm.xlu0 %30, %v24
  %v32 = vpop.permute.xlu0 %31
  %vm33 = vcmp.eq.s32.totalorder %v26, %v29
  %vm34 = vcmp.eq.s32.totalorder %v26, %v32
  %v35 = vsel %vm33, 1, 0
  %v36 = vsel %vm34, 1, 0
  %v37 = vcvt.s32.f32 %v35
  %v38 = vcvt.s32.f32 %v36
  %v39 = vld [vmem:[%s1] sm:$0xff]
  %v40 = vld [vmem:[%s1 + $0x8] sm:$0xff]
  %v41 = vld [vmem:[%s1 + $0x10] sm:$0xff]
  %v42 = vld [vmem:[%s1 + $0x18] sm:$0xff]
  %vm43 = vcmask 261120
  %v45 = vsel %vm43, %v37, 0
  %v48 = vsel %vm43, %v38, 0
  %50 = vmatpush.msra.mxu0 0.0
  %51 = vmatpush.msra.mxu0 0.0
  %52 = vmatpush.msra.mxu0 0.0
  %53 = vmatpush.msra.mxu0 0.0
  %54 = vmatpush.msra.mxu0 0.0
  %55 = vmatpush.msra.mxu0 0.0
  %56 = vmatpush.msra.mxu0 0.0
  %57 = vmatpush.msra.mxu0 0.0
  %58 = vmatpush.msra.mxu0 0.0
  %59 = vmatpush.msra.mxu0 0.0
  %60 = vmatpush.msra.mxu0 0.0
  %61 = vmatpush.msra.mxu0 0.0
  %62 = vmatpush.msra.mxu0 %v42
  %63 = vmatpush.msra.mxu0 %v41
  %64 = vmatpush.msra.mxu0 %v40
  %65 = vmatpush.msra.mxu0 %v39
  %66 = vmatmul.f32.gmra.mxu0 %v45
  %v67 = vpop.f32.mrf.mxu0
  %v68 = vadd.f32 0.0, %v67
  %69 = vmatmul.f32.gmra.mxu0 %v48
  %v70 = vpop.f32.mrf.mxu0
  %v71 = vadd.f32 0.0, %v70
  %72 = vdwg.mxu0
  %v73 = vld [vmem:[%s2] sm:$0xff]
  %v74 = vld [vmem:[%s2 + $0x8] sm:$0xff]
  %v75 = vld [vmem:[%s2 + $0x10] sm:$0xff]
  %v76 = vld [vmem:[%s2 + $0x18] sm:$0xff]
  %v77 = vld [vmem:[%s3] sm:$0x1]
  %v79 = vperm.slane %v77, 0
  %v82 = vsel %vm43, %v68, 0
  %v85 = vsel %vm43, %v71, 0
  %87 = vmatpush.msra.mxu0 0.0
  %88 = vmatpush.msra.mxu0 0.0
  %89 = vmatpush.msra.mxu0 0.0
  %90 = vmatpush.msra.mxu0 0.0
  %91 = vmatpush.msra.mxu0 0.0
  %92 = vmatpush.msra.mxu0 0.0
  %93 = vmatpush.msra.mxu0 0.0
  %94 = vmatpush.msra.mxu0 0.0
  %95 = vmatpush.msra.mxu0 0.0
  %96 = vmatpush.msra.mxu0 0.0
  %97 = vmatpush.msra.mxu0 0.0
  %98 = vmatpush.msra.mxu0 0.0
  %99 = vmatpush.msra.mxu0 %v76
  %100 = vmatpush.msra.mxu0 %v75
  %101 = vmatpush.msra.mxu0 %v74
  %102 = vmatpush.msra.mxu0 %v73
  %103 = vmatmul.f32.gmra.mxu0 %v82
  %v104 = vpop.f32.mrf.mxu0
  %v105 = vadd.f32 %v79, %v104
  %106 = vmatmul.f32.gmra.mxu0 %v85
  %v107 = vpop.f32.mrf.mxu0
  %v108 = vadd.f32 %v79, %v107
  %109 = vdwg.mxu0
  %v110 = vmax.f32 %v105, 0.0
  %v111 = vmax.f32 %v108, 0.0
  %v112 = vld [vmem:[%s4] sm:$0xff]
  %v113 = vld [vmem:[%s4 + $0x8] sm:$0xff]
  %v114 = vld [vmem:[%s4 + $0x10] sm:$0xff]
  %v115 = vld [vmem:[%s4 + $0x18] sm:$0xff]
  %v116 = vld [vmem:[%s5] sm:$0x1]
  %v118 = vperm.slane %v116, 0
  %v121 = vsel %vm43, %v110, 0
  %v124 = vsel %vm43, %v111, 0
  %126 = vmatpush.msra.mxu0 0.0
  %127 = vmatpush.msra.mxu0 0.0
  %128 = vmatpush.msra.mxu0 0.0
  %129 = vmatpush.msra.mxu0 0.0
  %130 = vmatpush.msra.mxu0 0.0
  %131 = vmatpush.msra.mxu0 0.0
  %132 = vmatpush.msra.mxu0 0.0
  %133 = vmatpush.msra.mxu0 0.0
  %134 = vmatpush.msra.mxu0 0.0
  %135 = vmatpush.msra.mxu0 0.0
  %136 = vmatpush.msra.mxu0 0.0
  %137 = vmatpush.msra.mxu0 0.0
  %138 = vmatpush.msra.mxu0 %v115
  %139 = vmatpush.msra.mxu0 %v114
  %140 = vmatpush.msra.mxu0 %v113
  %141 = vmatpush.msra.mxu0 %v112
  %142 = vmatmul.f32.gmra.mxu0 %v121
  %v143 = vpop.f32.mrf.mxu0
  %v144 = vadd.f32 %v118, %v143
  %145 = vmatmul.f32.gmra.mxu0 %v124
  %v146 = vpop.f32.mrf.mxu0
  %v147 = vadd.f32 %v118, %v146
  %148 = vdwg.mxu0
  %149 = vmax.xlane.f32.xlu0 %v144
  %v150 = vpop.xlane.xlu0 %149
  %151 = vmax.xlane.f32.xlu0 %v147
  %v152 = vpop.xlane.xlu0 %151
  %v153 = vsub.f32 %v144, %v150
  %v154 = vsub.f32 %v147, %v152
  %v155 = vmul.f32 %v153, 1.442695
  %v156 = vpow.pop %v155
  %v157 = vmul.f32 %v154, 1.442695
  %v158 = vpow.pop %v157
  %159 = vadd.xlane.f32.xlu0 %v156
  %v160 = vpop.xlane.xlu0 %159
  %161 = vadd.xlane.f32.xlu0 %v158
  %v162 = vpop.xlane.xlu0 %161
  %v163 = vrcp.pop %v160
  %v164 = vrcp.pop %v162
  %v165 = vmul.f32 %v160, %v163
  %v166 = vmul.f32 %v162, %v164
  %v167 = vsub.f32 2.0, %v165
  %v168 = vsub.f32 2.0, %v166
  %v169 = vmul.f32 %v163, %v167
  %v170 = vmul.f32 %v164, %v168
  %v171 = vmul.f32 %v156, %v169
  %v172 = vmul.f32 %v158, %v170
  %173 = vst [vmem:[%s6] sm:$0xff] %v171
  %174 = vst [vmem:[%s6 + $0x8] sm:$0xff] %v172
  // Predicated region
  $region26: #{_lambda_.1} parent=0 // pred_check
    _
  $region27: #{_lambda_.1} parent=0 // pred_check_branch
    %176 = sbr.rel (0) target = $region29
  $region28: #{_lambda_.1} parent=0 // pred_region
    _
  $region29: #{_lambda_.1} parent=0 // pred_fallthru
    _
  // Predicated region
  $region30: #{_lambda_.1} parent=0 // pred_check
    _
  $region31: #{_lambda_.1} parent=0 // pred_check_branch
    %178 = sbr.rel (0) target = $region33
  $region32: #{_lambda_.1} parent=0 // pred_region
    _
  $region33: #{_lambda_.1} parent=0 // pred_fallthru
    _

</llo_original>
